<compile_context>
chip_gen: v6e
topology: v6e:2x2x1
jax: 0.10.0
libtpu: 0.0.40
codegen_flags: <defaults>
</compile_context>

<pallas_src>
import functools

import jax
import jax.numpy as jnp
from jax.experimental import pallas as pl
from jax.experimental.pallas import tpu as pltpu

BN_EPS = 1e-5


def _ffm_kernel(x_ref, wm_ref, bnb_ref, w1_ref, b1_ref, w2_ref, b2_ref, o_ref,
                *, taps_off, tile_rows, w, hw):
    """One (batch, row-tile) step of the fused FeatureFusionModule.

    x_ref  : (1, 1, Cin, Lwin)  bf16  flattened padded row-tile (+2 lane slack)
    wm_ref : (Cout, 9*Cin)      bf16  conv3x3 weight, BN scale folded, taps on K
    bnb_ref: (Cout, 1)          f32   folded BN bias
    w1_ref : (Cout, Cout)       f32   conv1 (1x1) weight (OI)
    b1_ref : (Cout, 1)          f32
    w2_ref : (Cout, Cout)       f32   conv2 (1x1) weight (OI)
    b2_ref : (Cout, 1)          f32
    o_ref  : (1, n_tiles, Cout, L)  f32, VMEM-resident across the tile axis
    """
    t = pl.program_id(1)
    padded_w = w + 2
    L = tile_rows * padded_w

    # ---- ConvBlock: 3x3 conv as ONE matmul with taps folded into K ----
    xv = x_ref[0, 0]                                        # (Cin, Lwin) bf16
    # in-kernel im2col: 9 static lane-shifted views stacked along sublanes
    xcol = jnp.concatenate([xv[:, off:off + L] for off in taps_off], axis=0)
    acc = jnp.dot(wm_ref[...], xcol,
                  preferred_element_type=jnp.float32)       # (Cout, L) f32
    # eval-mode BatchNorm (folded) + ReLU
    # TODO(synk): training-mode BatchNorm (batch statistics) is not implemented.
    feat = jnp.maximum(acc + bnb_ref[...], 0.0)             # (Cout, L)

    # stash this tile's feature map in the resident output block
    o_ref[0, t] = feat

    # ---- finalize once all row-tiles of this image are done ----
    @pl.when(t == pl.num_programs(1) - 1)
    def _():
        feat_all = o_ref[0]                                 # (nt, Cout, L)

        # global average pool; mask the 2 spill-over columns per image row
        lane = jax.lax.broadcasted_iota(jnp.int32, (1, 1, L), 2)
        valid = (lane % padded_w) < w
        masked = jnp.where(valid, feat_all, 0.0)
        pooled = jnp.sum(jnp.sum(masked, axis=0), axis=1,
                         keepdims=True) * (1.0 / hw)        # (Cout, 1)

        # relu(conv1(pooled)) ; sigmoid(conv2(.)) -- tiny column-vector matmuls
        a = jnp.dot(w1_ref[...], pooled,
                    preferred_element_type=jnp.float32) + b1_ref[...]
        a = jnp.maximum(a, 0.0)
        z = jnp.dot(w2_ref[...], a,
                    preferred_element_type=jnp.float32) + b2_ref[...]
        gate = 1.0 / (1.0 + jnp.exp(-z))                    # (Cout, 1)

        # feature * gate + feature  ==  feature * (gate + 1)
        o_ref[0] = feat_all * (gate + 1.0)


def feature_fusion_forward(input_1, input_2, params, *, tile_rows=None,
                           vmem_limit_bytes=32 * 1024 * 1024):
    """input_1, input_2: NCHW float32. Returns NCHW (N, num_classes, H, W)."""
    n, c1, h, w = input_1.shape
    c2 = input_2.shape[1]
    cin = c1 + c2
    cout = params["w3"].shape[0]
    padded_w = w + 2

    # ---- pick the row-tile size (divisor of H, bounded by a VMEM budget) ----
    if tile_rows is None:
        per_row_bytes = cin * padded_w * 2                  # bf16 input row
        budget = 4 * 1024 * 1024                            # per pipeline buffer
        cap = max(1, budget // per_row_bytes - 2)
        tile_rows = max(d for d in range(1, h + 1) if h % d == 0 and d <= cap)
    assert h % tile_rows == 0, "tile_rows must divide H"
    nt = h // tile_rows
    L = tile_rows * padded_w                                # output lanes / tile
    lwin = (tile_rows + 2) * padded_w + 2                   # input lanes / tile

    # ---- glue: concat, bf16 cast, pad, cut into halo'd row tiles ----
    x = jnp.concatenate([input_1, input_2], axis=1)         # (N, Cin, H, W)
    x = x.astype(jnp.bfloat16)                              # MXU operand dtype
    x_pad = jnp.pad(x, ((0, 0), (0, 0), (1, 1), (1, 1)))    # (N, Cin, H+2, W+2)
    tiles = [x_pad[:, :, t * tile_rows:t * tile_rows + tile_rows + 2, :]
             for t in range(nt)]
    x_tiles = jnp.stack(tiles, axis=1)                      # (N, nt, Cin, TR+2, W+2)
    x_tiles = x_tiles.reshape(n, nt, cin, (tile_rows + 2) * padded_w)
    x_tiles = jnp.pad(x_tiles, ((0, 0), (0, 0), (0, 0), (0, 2)))  # +2 lane slack

    # ---- glue: fold BatchNorm into the (bias-free) 3x3 conv ----
    scale = params["gamma"] / jnp.sqrt(params["var"] + BN_EPS)        # (Cout,)
    w3_eff = params["w3"] * scale[:, None, None, None]                # (Cout,Cin,3,3)
    bn_bias = (params["beta"] - params["mean"] * scale).reshape(cout, 1)
    # taps folded into the contraction: Wm[o, (ky*3+kx)*Cin + c]
    wm = jnp.transpose(w3_eff, (0, 2, 3, 1)).reshape(cout, 9 * cin)
    wm = wm.astype(jnp.bfloat16)

    w1 = params["w1"].reshape(cout, cout).astype(jnp.float32)
    b1 = params["b1"].reshape(cout, 1).astype(jnp.float32)
    w2 = params["w2"].reshape(cout, cout).astype(jnp.float32)
    b2 = params["b2"].reshape(cout, 1).astype(jnp.float32)

    taps_off = tuple(ky * padded_w + kx for ky in range(3) for kx in range(3))
    kernel = functools.partial(_ffm_kernel, taps_off=taps_off,
                               tile_rows=tile_rows, w=w, hw=h * w)

    out = pl.pallas_call(
        kernel,
        out_shape=jax.ShapeDtypeStruct((n, nt, cout, L), jnp.float32),
        grid_spec=pltpu.PrefetchScalarGridSpec(
            num_scalar_prefetch=0,
            grid=(n, nt),
            in_specs=[
                pl.BlockSpec((1, 1, cin, lwin), lambda b, t: (b, t, 0, 0)),
                pl.BlockSpec((cout, 9 * cin), lambda b, t: (0, 0)),
                pl.BlockSpec((cout, 1), lambda b, t: (0, 0)),
                pl.BlockSpec((cout, cout), lambda b, t: (0, 0)),
                pl.BlockSpec((cout, 1), lambda b, t: (0, 0)),
                pl.BlockSpec((cout, cout), lambda b, t: (0, 0)),
                pl.BlockSpec((cout, 1), lambda b, t: (0, 0)),
            ],
            # whole per-image output stays VMEM-resident across the tile axis
            out_specs=pl.BlockSpec((1, nt, cout, L), lambda b, t: (b, 0, 0, 0)),
        ),
        compiler_params=pltpu.CompilerParams(
            dimension_semantics=("parallel", "arbitrary"),
            vmem_limit_bytes=vmem_limit_bytes),
    )(x_tiles, wm, bn_bias, w1, b1, w2, b2)

    # lane-dense (Cout, rows*(W+2)) layout -> NCHW is a cheap reshape + crop
    out = out.reshape(n, nt, cout, tile_rows, padded_w)
    out = jnp.transpose(out, (0, 2, 1, 3, 4)).reshape(n, cout, h, padded_w)
    return out[:, :, :, :w]


def _reference(input_1, input_2, params):
    """Pure-JAX reference (eval-mode BN, bf16 MXU operands like the kernel)."""
    x = jnp.concatenate([input_1, input_2], axis=1)
    scale = params["gamma"] / jnp.sqrt(params["var"] + BN_EPS)
    shift = params["beta"] - params["mean"] * scale
    w3_eff = params["w3"] * scale[:, None, None, None]
    y = jax.lax.conv_general_dilated(
        x.astype(jnp.bfloat16), w3_eff.astype(jnp.bfloat16),
        window_strides=(1, 1), padding=((1, 1), (1, 1)),
        dimension_numbers=("NCHW", "OIHW", "NCHW"),
        preferred_element_type=jnp.float32)
    feat = jnp.maximum(y + shift[None, :, None, None], 0.0)
    pooled = jnp.mean(feat, axis=(2, 3), keepdims=True)
    c = params["w1"].shape[0]
    a = jnp.einsum("oi,nihw->nohw", params["w1"].reshape(c, c), pooled)
    a = jnp.maximum(a + params["b1"][None, :, None, None], 0.0)
    z = jnp.einsum("oi,nihw->nohw", params["w2"].reshape(c, c), a)
    gate = jax.nn.sigmoid(z + params["b2"][None, :, None, None])
    return feat * gate + feat


if __name__ == "__main__":
    # small shapes consistent with the module: two NCHW feature maps concatenated
    num_classes = 4
    N, C1, C2, H, W = 2, 4, 4, 16, 16
    in_channels = C1 + C2

    key = jax.random.PRNGKey(0)
    keys = jax.random.split(key, 12)
    input_1 = jax.random.normal(keys[0], (N, C1, H, W), jnp.float32)
    input_2 = jax.random.normal(keys[1], (N, C2, H, W), jnp.float32)

    params = {
        # ConvBlock: conv3x3 (no bias) + BatchNorm2d
        "w3":    0.2 * jax.random.normal(keys[2], (num_classes, in_channels, 3, 3), jnp.float32),
        "gamma": 1.0 + 0.1 * jax.random.normal(keys[3], (num_classes,), jnp.float32),
        "beta":  0.1 * jax.random.normal(keys[4], (num_classes,), jnp.float32),
        "mean":  0.1 * jax.random.normal(keys[5], (num_classes,), jnp.float32),
        "var":   0.5 + jnp.abs(jax.random.normal(keys[6], (num_classes,), jnp.float32)),
        # conv1 / conv2: 1x1 convs with bias
        "w1": 0.3 * jax.random.normal(keys[7], (num_classes, num_classes, 1, 1), jnp.float32),
        "b1": 0.1 * jax.random.normal(keys[8], (num_classes,), jnp.float32),
        "w2": 0.3 * jax.random.normal(keys[9], (num_classes, num_classes, 1, 1), jnp.float32),
        "b2": 0.1 * jax.random.normal(keys[10], (num_classes,), jnp.float32),
    }

    # tile_rows=8 -> 2 spatial tiles per image, exercising the tiled/finalize path
    out = feature_fusion_forward(input_1, input_2, params, tile_rows=8)
    out = jax.block_until_ready(out)

    ref = jax.block_until_ready(_reference(input_1, input_2, params))
    assert out.shape == (N, num_classes, H, W), out.shape
    assert jnp.allclose(out, ref, rtol=1e-2, atol=1e-2), \
        float(jnp.max(jnp.abs(out - ref)))

    print("KERNEL_OK")
</pallas_src>

<mosaic_0001>
module attributes {stable_mosaic.version = 11 : i64} {
  func.func @_ffm_kernel(%arg0: i32, %arg1: i32, %arg2: memref<1x1x8x182xbf16, #tpu.memory_space<vmem>>, %arg3: memref<4x72xbf16, #tpu.memory_space<vmem>>, %arg4: memref<4x1xf32, #tpu.memory_space<vmem>>, %arg5: memref<4x4xf32, #tpu.memory_space<vmem>>, %arg6: memref<4x1xf32, #tpu.memory_space<vmem>>, %arg7: memref<4x4xf32, #tpu.memory_space<vmem>>, %arg8: memref<4x1xf32, #tpu.memory_space<vmem>>, %arg9: memref<1x2x4x144xf32, #tpu.memory_space<vmem>>) attributes {dimension_semantics = [#tpu.dimension_semantics<parallel>, #tpu.dimension_semantics<arbitrary>], iteration_bounds = array<i64: 2, 2>, scalar_prefetch = 0 : i64, scratch_operands = 0 : i64, tpu.core_type = #tpu.core_type<tc>, window_params = [{transform_indices = @transform_0, window_bounds = array<i64: 1, 1, 8, 182>}, {pipeline_mode = #tpu.pipeline_mode<synchronous>, transform_indices = @transform_1, window_bounds = array<i64: 4, 72>}, {pipeline_mode = #tpu.pipeline_mode<synchronous>, transform_indices = @transform_2, window_bounds = array<i64: 4, 1>}, {pipeline_mode = #tpu.pipeline_mode<synchronous>, transform_indices = @transform_3, window_bounds = array<i64: 4, 4>}, {pipeline_mode = #tpu.pipeline_mode<synchronous>, transform_indices = @transform_4, window_bounds = array<i64: 4, 1>}, {pipeline_mode = #tpu.pipeline_mode<synchronous>, transform_indices = @transform_5, window_bounds = array<i64: 4, 4>}, {pipeline_mode = #tpu.pipeline_mode<synchronous>, transform_indices = @transform_6, window_bounds = array<i64: 4, 1>}, {transform_indices = @transform_7, window_bounds = array<i64: 1, 2, 4, 144>}]} {
    %c0 = arith.constant 0 : index
    %c0_0 = arith.constant 0 : index
    %c0_1 = arith.constant 0 : index
    %c0_2 = arith.constant 0 : index
    %0 = vector.load %arg2[%c0, %c0_0, %c0_1, %c0_2] : memref<1x1x8x182xbf16, #tpu.memory_space<vmem>>, vector<1x1x8x182xbf16>
    %1 = vector.shape_cast %0 : vector<1x1x8x182xbf16> to vector<8x182xbf16>
    %2 = vector.extract_strided_slice %1 {offsets = [0, 0], sizes = [8, 144], strides = [1, 1]} : vector<8x182xbf16> to vector<8x144xbf16>
    %3 = vector.extract_strided_slice %1 {offsets = [0, 1], sizes = [8, 144], strides = [1, 1]} : vector<8x182xbf16> to vector<8x144xbf16>
    %4 = vector.extract_strided_slice %1 {offsets = [0, 2], sizes = [8, 144], strides = [1, 1]} : vector<8x182xbf16> to vector<8x144xbf16>
    %5 = vector.extract_strided_slice %1 {offsets = [0, 18], sizes = [8, 144], strides = [1, 1]} : vector<8x182xbf16> to vector<8x144xbf16>
    %6 = vector.extract_strided_slice %1 {offsets = [0, 19], sizes = [8, 144], strides = [1, 1]} : vector<8x182xbf16> to vector<8x144xbf16>
    %7 = vector.extract_strided_slice %1 {offsets = [0, 20], sizes = [8, 144], strides = [1, 1]} : vector<8x182xbf16> to vector<8x144xbf16>
    %8 = vector.extract_strided_slice %1 {offsets = [0, 36], sizes = [8, 144], strides = [1, 1]} : vector<8x182xbf16> to vector<8x144xbf16>
    %9 = vector.extract_strided_slice %1 {offsets = [0, 37], sizes = [8, 144], strides = [1, 1]} : vector<8x182xbf16> to vector<8x144xbf16>
    %10 = vector.extract_strided_slice %1 {offsets = [0, 38], sizes = [8, 144], strides = [1, 1]} : vector<8x182xbf16> to vector<8x144xbf16>
    %11 = tpu.concatenate %2, %3, %4, %5, %6, %7, %8, %9, %10 in 0 : vector<8x144xbf16>, vector<8x144xbf16>, vector<8x144xbf16>, vector<8x144xbf16>, vector<8x144xbf16>, vector<8x144xbf16>, vector<8x144xbf16>, vector<8x144xbf16>, vector<8x144xbf16> -> vector<72x144xbf16>
    %c0_3 = arith.constant 0 : index
    %c0_4 = arith.constant 0 : index
    %12 = vector.load %arg3[%c0_3, %c0_4] : memref<4x72xbf16, #tpu.memory_space<vmem>>, vector<4x72xbf16>
    %cst = arith.constant dense<0.000000e+00> : vector<4x144xf32>
    %13 = tpu.matmul %12, %11, %cst {dimension_numbers = #tpu.dot_dimension_numbers<[1], [0], [0], [1], [0, 0, 1, 1], [], []>} : vector<4x72xbf16>, vector<72x144xbf16>, vector<4x144xf32> -> vector<4x144xf32>
    %c0_5 = arith.constant 0 : index
    %c0_6 = arith.constant 0 : index
    %14 = vector.load %arg4[%c0_5, %c0_6] : memref<4x1xf32, #tpu.memory_space<vmem>>, vector<4x1xf32>
    %15 = vector.broadcast %14 : vector<4x1xf32> to vector<4x144xf32>
    %16 = arith.addf %13, %15 : vector<4x144xf32>
    %cst_7 = arith.constant 0.000000e+00 : f32
    %17 = vector.broadcast %cst_7 : f32 to vector<4x144xf32>
    %18 = arith.maximumf %16, %17 : vector<4x144xf32>
    %c0_8 = arith.constant 0 : index
    %19 = arith.index_cast %arg1 : i32 to index
    %c0_9 = arith.constant 0 : index
    %c0_10 = arith.constant 0 : index
    %20 = vector.load %arg9[%c0_8, %19, %c0_9, %c0_10] : memref<1x2x4x144xf32, #tpu.memory_space<vmem>>, vector<1x1x4x144xf32>
    %21 = vector.shape_cast %20 : vector<1x1x4x144xf32> to vector<4x144xf32>
    %22 = vector.shape_cast %18 : vector<4x144xf32> to vector<1x1x4x144xf32>
    tpu.vector_store %arg9[%c0_8, %19, %c0_9, %c0_10], %22 {strides = array<i32>} : memref<1x2x4x144xf32, #tpu.memory_space<vmem>>, vector<1x1x4x144xf32>,
    %c1_i32 = arith.constant 1 : i32
    %23 = arith.cmpi eq, %arg1, %c1_i32 : i32
    %24 = arith.extui %23 : i1 to i32
    %c0_i32 = arith.constant 0 : i32
    %25 = arith.cmpi ne, %24, %c0_i32 : i32
    scf.if %25 {
      %c0_11 = arith.constant 0 : index
      %c0_12 = arith.constant 0 : index
      %c0_13 = arith.constant 0 : index
      %c0_14 = arith.constant 0 : index
      %26 = vector.load %arg9[%c0_11, %c0_12, %c0_13, %c0_14] : memref<1x2x4x144xf32, #tpu.memory_space<vmem>>, vector<1x2x4x144xf32>
      %27 = vector.shape_cast %26 : vector<1x2x4x144xf32> to vector<2x4x144xf32>
      %28 = tpu.iota {dimensions = array<i32: 2>} : vector<1x1x144xi32>
      %c18_i32 = arith.constant 18 : i32
      %c0_i32_15 = arith.constant 0 : i32
      %29 = arith.cmpi eq, %c18_i32, %c0_i32_15 : i32
      %c1_i32_16 = arith.constant 1 : i32
      %30 = arith.select %29, %c1_i32_16, %c18_i32 : i32
      %31 = vector.broadcast %30 : i32 to vector<1x1x144xi32>
      %32 = arith.remsi %28, %31 : vector<1x1x144xi32>
      %c0_i32_17 = arith.constant 0 : i32
      %33 = vector.broadcast %c0_i32_17 : i32 to vector<1x1x144xi32>
      %34 = arith.cmpi ne, %32, %33 : vector<1x1x144xi32>
      %c0_i32_18 = arith.constant 0 : i32
      %35 = vector.broadcast %c0_i32_18 : i32 to vector<1x1x144xi32>
      %36 = arith.cmpi slt, %32, %35 : vector<1x1x144xi32>
      %c0_i32_19 = arith.constant 0 : i32
      %37 = arith.cmpi slt, %30, %c0_i32_19 : i32
      %38 = vector.broadcast %37 : i1 to vector<1x1x144xi1>
      %39 = vector.broadcast %38 : vector<1x1x144xi1> to vector<1x1x144xi1>
      %40 = arith.xori %36, %39 : vector<1x1x144xi1>
      %41 = arith.andi %40, %34 : vector<1x1x144xi1>
      %42 = vector.broadcast %30 : i32 to vector<1x1x144xi32>
      %43 = arith.addi %32, %42 : vector<1x1x144xi32>
      %44 = arith.select %41, %43, %32 : vector<1x1x144xi1>, vector<1x1x144xi32>
      %c16_i32 = arith.constant 16 : i32
      %45 = vector.broadcast %c16_i32 : i32 to vector<1x1x144xi32>
      %46 = arith.cmpi slt, %44, %45 : vector<1x1x144xi32>
      %cst_20 = arith.constant 0.000000e+00 : f32
      %47 = vector.shape_cast %46 : vector<1x1x144xi1> to vector<1x1x144xi1>
      %48 = vector.broadcast %47 : vector<1x1x144xi1> to vector<2x4x144xi1>
      %49 = vector.broadcast %cst_20 : f32 to vector<2x4x144xf32>
      %50 = arith.select %48, %27, %49 : vector<2x4x144xi1>, vector<2x4x144xf32>
      %cst_21 = arith.constant dense<0.000000e+00> : vector<4x144xf32>
      %51 = vector.multi_reduction <add>, %50, %cst_21 [0] : vector<2x4x144xf32> to vector<4x144xf32>
      %cst_22 = arith.constant dense<0.000000e+00> : vector<4xf32>
      %52 = vector.multi_reduction <add>, %51, %cst_22 [1] : vector<4x144xf32> to vector<4xf32>
      %53 = vector.shape_cast %52 : vector<4xf32> to vector<4x1xf32>
      %cst_23 = arith.constant 3.906250e-03 : f32
      %54 = vector.broadcast %cst_23 : f32 to vector<4x1xf32>
      %55 = arith.mulf %53, %54 : vector<4x1xf32>
      %c0_24 = arith.constant 0 : index
      %c0_25 = arith.constant 0 : index
      %56 = vector.load %arg5[%c0_24, %c0_25] : memref<4x4xf32, #tpu.memory_space<vmem>>, vector<4x4xf32>
      %cst_26 = arith.constant dense<0.000000e+00> : vector<4x1xf32>
      %57 = tpu.matmul %56, %55, %cst_26 {dimension_numbers = #tpu.dot_dimension_numbers<[1], [0], [0], [1], [0, 0, 1, 1], [], []>} : vector<4x4xf32>, vector<4x1xf32>, vector<4x1xf32> -> vector<4x1xf32>
      %c0_27 = arith.constant 0 : index
      %c0_28 = arith.constant 0 : index
      %58 = vector.load %arg6[%c0_27, %c0_28] : memref<4x1xf32, #tpu.memory_space<vmem>>, vector<4x1xf32>
      %59 = arith.addf %57, %58 : vector<4x1xf32>
      %cst_29 = arith.constant 0.000000e+00 : f32
      %60 = vector.broadcast %cst_29 : f32 to vector<4x1xf32>
      %61 = arith.maximumf %59, %60 : vector<4x1xf32>
      %c0_30 = arith.constant 0 : index
      %c0_31 = arith.constant 0 : index
      %62 = vector.load %arg7[%c0_30, %c0_31] : memref<4x4xf32, #tpu.memory_space<vmem>>, vector<4x4xf32>
      %cst_32 = arith.constant dense<0.000000e+00> : vector<4x1xf32>
      %63 = tpu.matmul %62, %61, %cst_32 {dimension_numbers = #tpu.dot_dimension_numbers<[1], [0], [0], [1], [0, 0, 1, 1], [], []>} : vector<4x4xf32>, vector<4x1xf32>, vector<4x1xf32> -> vector<4x1xf32>
      %c0_33 = arith.constant 0 : index
      %c0_34 = arith.constant 0 : index
      %64 = vector.load %arg8[%c0_33, %c0_34] : memref<4x1xf32, #tpu.memory_space<vmem>>, vector<4x1xf32>
      %65 = arith.addf %63, %64 : vector<4x1xf32>
      %cst_35 = arith.constant 0.000000e+00 : f32
      %66 = vector.broadcast %cst_35 : f32 to vector<4x1xf32>
      %67 = arith.subf %66, %65 : vector<4x1xf32>
      %68 = math.exp %67 : vector<4x1xf32>
      %cst_36 = arith.constant 1.000000e+00 : f32
      %69 = vector.broadcast %cst_36 : f32 to vector<4x1xf32>
      %70 = arith.addf %69, %68 : vector<4x1xf32>
      %cst_37 = arith.constant 1.000000e+00 : f32
      %71 = vector.broadcast %cst_37 : f32 to vector<4x1xf32>
      %72 = arith.divf %71, %70 : vector<4x1xf32>
      %cst_38 = arith.constant 1.000000e+00 : f32
      %73 = vector.broadcast %cst_38 : f32 to vector<4x1xf32>
      %74 = arith.addf %72, %73 : vector<4x1xf32>
      %75 = vector.shape_cast %74 : vector<4x1xf32> to vector<1x4x1xf32>
      %76 = vector.broadcast %75 : vector<1x4x1xf32> to vector<2x4x144xf32>
      %77 = arith.mulf %27, %76 : vector<2x4x144xf32>
      %c0_39 = arith.constant 0 : index
      %c0_40 = arith.constant 0 : index
      %c0_41 = arith.constant 0 : index
      %c0_42 = arith.constant 0 : index
      %78 = vector.load %arg9[%c0_39, %c0_40, %c0_41, %c0_42] : memref<1x2x4x144xf32, #tpu.memory_space<vmem>>, vector<1x2x4x144xf32>
      %79 = vector.shape_cast %78 : vector<1x2x4x144xf32> to vector<2x4x144xf32>
      %80 = vector.shape_cast %77 : vector<2x4x144xf32> to vector<1x2x4x144xf32>
      tpu.vector_store %arg9[%c0_39, %c0_40, %c0_41, %c0_42], %80 {strides = array<i32>} : memref<1x2x4x144xf32, #tpu.memory_space<vmem>>, vector<1x2x4x144xf32>,
    } else {
    }
    return
  }
  func.func @transform_0(%arg0: i32, %arg1: i32) -> (i32, i32, i32, i32) {
    %c0_i32 = arith.constant 0 : i32
    %c0_i32_0 = arith.constant 0 : i32
    %c0_i32_1 = arith.constant 0 : i32
    return %arg0, %arg1, %c0_i32, %c0_i32_0 : i32, i32, i32, i32
  }
  func.func @transform_1(%arg0: i32, %arg1: i32) -> (i32, i32) {
    %c0_i32 = arith.constant 0 : i32
    %c0_i32_0 = arith.constant 0 : i32
    %c0_i32_1 = arith.constant 0 : i32
    return %c0_i32, %c0_i32_0 : i32, i32
  }
  func.func @transform_2(%arg0: i32, %arg1: i32) -> (i32, i32) {
    %c0_i32 = arith.constant 0 : i32
    %c0_i32_0 = arith.constant 0 : i32
    %c0_i32_1 = arith.constant 0 : i32
    return %c0_i32, %c0_i32_0 : i32, i32
  }
  func.func @transform_3(%arg0: i32, %arg1: i32) -> (i32, i32) {
    %c0_i32 = arith.constant 0 : i32
    %c0_i32_0 = arith.constant 0 : i32
    %c0_i32_1 = arith.constant 0 : i32
    return %c0_i32, %c0_i32_0 : i32, i32
  }
  func.func @transform_4(%arg0: i32, %arg1: i32) -> (i32, i32) {
    %c0_i32 = arith.constant 0 : i32
    %c0_i32_0 = arith.constant 0 : i32
    %c0_i32_1 = arith.constant 0 : i32
    return %c0_i32, %c0_i32_0 : i32, i32
  }
  func.func @transform_5(%arg0: i32, %arg1: i32) -> (i32, i32) {
    %c0_i32 = arith.constant 0 : i32
    %c0_i32_0 = arith.constant 0 : i32
    %c0_i32_1 = arith.constant 0 : i32
    return %c0_i32, %c0_i32_0 : i32, i32
  }
  func.func @transform_6(%arg0: i32, %arg1: i32) -> (i32, i32) {
    %c0_i32 = arith.constant 0 : i32
    %c0_i32_0 = arith.constant 0 : i32
    %c0_i32_1 = arith.constant 0 : i32
    return %c0_i32, %c0_i32_0 : i32, i32
  }
  func.func @transform_7(%arg0: i32, %arg1: i32) -> (i32, i32, i32, i32) {
    %c0_i32 = arith.constant 0 : i32
    %c0_i32_0 = arith.constant 0 : i32
    %c0_i32_1 = arith.constant 0 : i32
    %c0_i32_2 = arith.constant 0 : i32
    return %arg0, %c0_i32, %c0_i32_0, %c0_i32_1 : i32, i32, i32, i32
  }
}

</mosaic_0001>

<llo_original>
// kernel: tpu_custom_call.1
$region0: #{tpu_custom_call.1}
  #allocation0 [shape = 'u32[]', space=smem, size = 0x4, offset = 0x4, fixed_abs, tag = 'smem constant byte address 0x4 - core index']
  #allocation1 [shape = 'u32[144,128]{1,0:T(1,128)}', space=vmem, size = 0x12000, scoped, tag = 'internal scratch']
  %s0 = inlined_call_operand.hbm [shape: bf16[2,2,8,182], index: 0, kind: input, shape index: {}]
  %s1 = inlined_call_operand.vmem [shape: bf16[4,72], index: 1, kind: input, shape index: {}]
  %s2 = inlined_call_operand.vmem [shape: f32[4,1], index: 2, kind: input, shape index: {}]
  %s3 = inlined_call_operand.vmem [shape: f32[4,4], index: 3, kind: input, shape index: {}]
  %s4 = inlined_call_operand.vmem [shape: f32[4,1], index: 4, kind: input, shape index: {}]
  %s5 = inlined_call_operand.vmem [shape: f32[4,4], index: 5, kind: input, shape index: {}]
  %s6 = inlined_call_operand.vmem [shape: f32[4,1], index: 6, kind: input, shape index: {}]
  %s7 = inlined_call_operand.hbm [shape: f32[2,2,4,144], index: 7, kind: output, shape index: {}]
  %s8 = sld [smem:[#allocation0]]
  $region69: #{tpu_custom_call.1} parent=0
    _
  %s10 = ssub.s32 1, %s8
  %s11 = scalar_select 0, %s10, %s8
  $region1: #{tpu_custom_call.1} parent=0
    #allocation2 [shape = 'u8[8192]{0}', space=vmem, size = 0x2000, scoped, tag = 'input window, operand 0']
    #allocation3 [shape = 's32[2]{0}', space=sflag, size = 0x8, scoped, tag = 'scoped memory for tpu_custom_call.1']
    #allocation4 [shape = 's32[2]{0}', space=sflag, size = 0x8, scoped, tag = 'scoped memory for tpu_custom_call.1']
    #allocation5 [shape = 'u8[16384]{0}', space=vmem, size = 0x4000, scoped, tag = 'output window, operand 0']
    %12 = vsyncpa [#allocation3], 0
    %s13 = scalar_lea.sflag [#allocation3], 1
    %14 = vsyncpa %s13, 0
    %15 = vsyncpa [#allocation4], 0
    %s16 = scalar_lea.sflag [#allocation4], 1
    %17 = vsyncpa %s16, 0
    loop: start=0, step=1, limit=6
    $region2: #{tpu_custom_call.1} parent=1 // loop_pre_header
      _
    $region3: #{tpu_custom_call.1} parent=1 // loop_header
      %s19 = sphi 0, %s23
      %p20 = scmp.ge.s32.totalorder %s19, 6
      %s26 = sphi 0, %s38
      %s27 = sphi 0, %s34
      %s28 = sphi 0, %s26
      %s29 = sphi 0, %s27
      %s30 = sphi 0, %s28
      %s31 = sphi 0, %s29
      %s43 = sphi 0, %s45
      %s46 = sphi 0, %s43
      %s47 = sphi 0, %s46
      %s63 = sphi 0, %s47
      %s67 = sphi 0, %s67
      %s69 = sphi 0, %s67
      %s70 = sphi 0, %s69
      %s84 = sphi 0, %s70
      %s88 = sphi 0, %s88
      %s90 = sphi 0, %s88
      %s91 = sphi 0, %s90
      %s105 = sphi 0, %s91
      %s109 = sphi 0, %s109
      %s111 = sphi 0, %s109
      %s112 = sphi 0, %s111
      %s126 = sphi 0, %s112
      %s130 = sphi 0, %s130
      %s132 = sphi 0, %s130
      %s133 = sphi 0, %s132
      %s147 = sphi 0, %s133
      %s151 = sphi 0, %s151
      %s153 = sphi 0, %s151
      %s154 = sphi 0, %s153
      %s168 = sphi 0, %s154
      %s172 = sphi 0, %s172
      %s174 = sphi 0, %s172
      %s175 = sphi 0, %s174
      %s189 = sphi 0, %s175
      %s195 = sphi 0, %s197
      %s198 = sphi 0, %s195
      %s199 = sphi 0, %s198
      %s215 = sphi 0, %s199
    $region4: #{tpu_custom_call.1} parent=1 // loop_header_branch
      %22 = sbr.rel (%p20) target = $region8
    $region5: #{tpu_custom_call.1} parent=1 // loop_body
      %s24 = ssub.s32 %s19, 1
      %s25 = ssub.s32 %s19, 2
      %s32 = sadd.s32 1, %s27
      %p33 = scmp.ge.s32.totalorder %s32, 2
      %s34 = scalar_select %p33, 0, %s32
      %s35 = sadd.s32 1, %s26
      %s36 = scalar_select %p33, %s35, %s26
      %p37 = scmp.ge.s32.totalorder %s36, 2
      %s38 = scalar_select %p37, 0, %s36
      %s39 = ssub.s32 %s26, %s38
      %s40 = ssub.s32 %s27, %s34
      %s41 = sor.u32 %s39, %s40
      %p42 = scmp.eq.s32.totalorder %s41, 0
      %s44 = sadd.s32 %s43, 1
      %s45 = scalar_select %p42, %s43, %s44
      %p48 = pneg %p42
      %p49 = scmp.eq.s32.totalorder %s19, 3
      %p50 = por %p48, %p49
      %p51 = scmp.ne.s32.totalorder %s43, %s46
      %p52 = scmp.eq.s32.totalorder %s19, 0
      %p53 = por %p51, %p52
      %p54 = scmp.ne.s32.totalorder %s43, %s46
      %p55 = scmp.eq.s32.totalorder %s24, 3
      %p56 = por %p54, %p55
      %p57 = scmp.ne.s32.totalorder %s46, %s47
      %p58 = scmp.eq.s32.totalorder %s24, 0
      %p59 = por %p57, %p58
      %p60 = scmp.ne.s32.totalorder %s46, %s47
      %p61 = scmp.eq.s32.totalorder %s25, 3
      %p62 = por %p60, %p61
      %p64 = scmp.ne.s32.totalorder %s47, %s63
      %p65 = scmp.eq.s32.totalorder %s25, 0
      %p66 = por %p64, %p65
      %s68 = sadd.s32 %s67, 1
      %p71 = scmp.eq.s32.totalorder %s19, 3
      %p72 = scmp.ne.s32.totalorder %s67, %s69
      %p73 = scmp.eq.s32.totalorder %s19, 0
      %p74 = por %p72, %p73
      %p75 = scmp.ne.s32.totalorder %s67, %s69
      %p76 = scmp.eq.s32.totalorder %s24, 3
      %p77 = por %p75, %p76
      %p78 = scmp.ne.s32.totalorder %s69, %s70
      %p79 = scmp.eq.s32.totalorder %s24, 0
      %p80 = por %p78, %p79
      %p81 = scmp.ne.s32.totalorder %s69, %s70
      %p82 = scmp.eq.s32.totalorder %s25, 3
      %p83 = por %p81, %p82
      %p85 = scmp.ne.s32.totalorder %s70, %s84
      %p86 = scmp.eq.s32.totalorder %s25, 0
      %p87 = por %p85, %p86
      %s89 = sadd.s32 %s88, 1
      %p92 = scmp.eq.s32.totalorder %s19, 3
      %p93 = scmp.ne.s32.totalorder %s88, %s90
      %p94 = scmp.eq.s32.totalorder %s19, 0
      %p95 = por %p93, %p94
      %p96 = scmp.ne.s32.totalorder %s88, %s90
      %p97 = scmp.eq.s32.totalorder %s24, 3
      %p98 = por %p96, %p97
      %p99 = scmp.ne.s32.totalorder %s90, %s91
      %p100 = scmp.eq.s32.totalorder %s24, 0
      %p101 = por %p99, %p100
      %p102 = scmp.ne.s32.totalorder %s90, %s91
      %p103 = scmp.eq.s32.totalorder %s25, 3
      %p104 = por %p102, %p103
      %p106 = scmp.ne.s32.totalorder %s91, %s105
      %p107 = scmp.eq.s32.totalorder %s25, 0
      %p108 = por %p106, %p107
      %s110 = sadd.s32 %s109, 1
      %p113 = scmp.eq.s32.totalorder %s19, 3
      %p114 = scmp.ne.s32.totalorder %s109, %s111
      %p115 = scmp.eq.s32.totalorder %s19, 0
      %p116 = por %p114, %p115
      %p117 = scmp.ne.s32.totalorder %s109, %s111
      %p118 = scmp.eq.s32.totalorder %s24, 3
      %p119 = por %p117, %p118
      %p120 = scmp.ne.s32.totalorder %s111, %s112
      %p121 = scmp.eq.s32.totalorder %s24, 0
      %p122 = por %p120, %p121
      %p123 = scmp.ne.s32.totalorder %s111, %s112
      %p124 = scmp.eq.s32.totalorder %s25, 3
      %p125 = por %p123, %p124
      %p127 = scmp.ne.s32.totalorder %s112, %s126
      %p128 = scmp.eq.s32.totalorder %s25, 0
      %p129 = por %p127, %p128
      %s131 = sadd.s32 %s130, 1
      %p134 = scmp.eq.s32.totalorder %s19, 3
      %p135 = scmp.ne.s32.totalorder %s130, %s132
      %p136 = scmp.eq.s32.totalorder %s19, 0
      %p137 = por %p135, %p136
      %p138 = scmp.ne.s32.totalorder %s130, %s132
      %p139 = scmp.eq.s32.totalorder %s24, 3
      %p140 = por %p138, %p139
      %p141 = scmp.ne.s32.totalorder %s132, %s133
      %p142 = scmp.eq.s32.totalorder %s24, 0
      %p143 = por %p141, %p142
      %p144 = scmp.ne.s32.totalorder %s132, %s133
      %p145 = scmp.eq.s32.totalorder %s25, 3
      %p146 = por %p144, %p145
      %p148 = scmp.ne.s32.totalorder %s133, %s147
      %p149 = scmp.eq.s32.totalorder %s25, 0
      %p150 = por %p148, %p149
      %s152 = sadd.s32 %s151, 1
      %p155 = scmp.eq.s32.totalorder %s19, 3
      %p156 = scmp.ne.s32.totalorder %s151, %s153
      %p157 = scmp.eq.s32.totalorder %s19, 0
      %p158 = por %p156, %p157
      %p159 = scmp.ne.s32.totalorder %s151, %s153
      %p160 = scmp.eq.s32.totalorder %s24, 3
      %p161 = por %p159, %p160
      %p162 = scmp.ne.s32.totalorder %s153, %s154
      %p163 = scmp.eq.s32.totalorder %s24, 0
      %p164 = por %p162, %p163
      %p165 = scmp.ne.s32.totalorder %s153, %s154
      %p166 = scmp.eq.s32.totalorder %s25, 3
      %p167 = por %p165, %p166
      %p169 = scmp.ne.s32.totalorder %s154, %s168
      %p170 = scmp.eq.s32.totalorder %s25, 0
      %p171 = por %p169, %p170
      %s173 = sadd.s32 %s172, 1
      %p176 = scmp.eq.s32.totalorder %s19, 3
      %p177 = scmp.ne.s32.totalorder %s172, %s174
      %p178 = scmp.eq.s32.totalorder %s19, 0
      %p179 = por %p177, %p178
      %p180 = scmp.ne.s32.totalorder %s172, %s174
      %p181 = scmp.eq.s32.totalorder %s24, 3
      %p182 = por %p180, %p181
      %p183 = scmp.ne.s32.totalorder %s174, %s175
      %p184 = scmp.eq.s32.totalorder %s24, 0
      %p185 = por %p183, %p184
      %p186 = scmp.ne.s32.totalorder %s174, %s175
      %p187 = scmp.eq.s32.totalorder %s25, 3
      %p188 = por %p186, %p187
      %p190 = scmp.ne.s32.totalorder %s175, %s189
      %p191 = scmp.eq.s32.totalorder %s25, 0
      %p192 = por %p190, %p191
      %s193 = ssub.s32 %s26, %s38
      %p194 = scmp.eq.s32.totalorder %s193, 0
      %s196 = sadd.s32 %s195, 1
      %s197 = scalar_select %p194, %s195, %s196
      %p200 = pneg %p194
      %p201 = scmp.eq.s32.totalorder %s19, 3
      %p202 = por %p200, %p201
      %p203 = scmp.ne.s32.totalorder %s195, %s198
      %p204 = scmp.eq.s32.totalorder %s19, 0
      %p205 = por %p203, %p204
      %p206 = scmp.ne.s32.totalorder %s195, %s198
      %p207 = scmp.eq.s32.totalorder %s24, 3
      %p208 = por %p206, %p207
      %p209 = scmp.ne.s32.totalorder %s198, %s199
      %p210 = scmp.eq.s32.totalorder %s24, 0
      %p211 = por %p209, %p210
      %p212 = scmp.ne.s32.totalorder %s198, %s199
      %p213 = scmp.eq.s32.totalorder %s25, 3
      %p214 = por %p212, %p213
      %p216 = scmp.ne.s32.totalorder %s199, %s215
      %p217 = scmp.eq.s32.totalorder %s25, 0
      %p218 = por %p216, %p217
      %p219 = scmp.le.s32.totalorder 1, %s19
      %p220 = scmp.lt.s32.totalorder %s19, 5
      %p221 = pnand %p219, %p220
      %p222 = pneg %p221
      // Predicated region
      $region9: #{tpu_custom_call.1} parent=5 // pred_check
        _
      $region10: #{tpu_custom_call.1} parent=5 // pred_check_branch
        %224 = sbr.rel (%p221) target = $region12
      $region11: #{tpu_custom_call.1} parent=5 // pred_region
        %s225 = ssub.s32 %s19, 1
        // Predicated region
        $region13: #{tpu_custom_call.1} parent=11 // pred_check
          %p226 = pneg %p80
        $region14: #{tpu_custom_call.1} parent=11 // pred_check_branch
          %228 = sbr.rel (%p226) target = $region16
        $region15: #{tpu_custom_call.1} parent=11 // pred_region
          _
        $region16: #{tpu_custom_call.1} parent=11 // pred_fallthru
          _
        // Predicated region
        $region17: #{tpu_custom_call.1} parent=11 // pred_check
          %p229 = pneg %p101
        $region18: #{tpu_custom_call.1} parent=11 // pred_check_branch
          %231 = sbr.rel (%p229) target = $region20
        $region19: #{tpu_custom_call.1} parent=11 // pred_region
          _
        $region20: #{tpu_custom_call.1} parent=11 // pred_fallthru
          _
        // Predicated region
        $region21: #{tpu_custom_call.1} parent=11 // pred_check
          %p232 = pneg %p122
        $region22: #{tpu_custom_call.1} parent=11 // pred_check_branch
          %234 = sbr.rel (%p232) target = $region24
        $region23: #{tpu_custom_call.1} parent=11 // pred_region
          _
        $region24: #{tpu_custom_call.1} parent=11 // pred_fallthru
          _
        // Predicated region
        $region25: #{tpu_custom_call.1} parent=11 // pred_check
          %p235 = pneg %p143
        $region26: #{tpu_custom_call.1} parent=11 // pred_check_branch
          %237 = sbr.rel (%p235) target = $region28
        $region27: #{tpu_custom_call.1} parent=11 // pred_region
          _
        $region28: #{tpu_custom_call.1} parent=11 // pred_fallthru
          _
        // Predicated region
        $region29: #{tpu_custom_call.1} parent=11 // pred_check
          %p238 = pneg %p164
        $region30: #{tpu_custom_call.1} parent=11 // pred_check_branch
          %240 = sbr.rel (%p238) target = $region32
        $region31: #{tpu_custom_call.1} parent=11 // pred_region
          _
        $region32: #{tpu_custom_call.1} parent=11 // pred_fallthru
          _
        // Predicated region
        $region33: #{tpu_custom_call.1} parent=11 // pred_check
          %p241 = pneg %p185
        $region34: #{tpu_custom_call.1} parent=11 // pred_check_branch
          %243 = sbr.rel (%p241) target = $region36
        $region35: #{tpu_custom_call.1} parent=11 // pred_region
          _
        $region36: #{tpu_custom_call.1} parent=11 // pred_fallthru
          _
      $region12: #{tpu_custom_call.1} parent=5 // pred_fallthru
        _
      %p244 = scmp.lt.s32.totalorder %s19, 4
      // Predicated region
      $region37: #{tpu_custom_call.1} parent=5 // pred_check
        %p245 = pneg %p244
      $region38: #{tpu_custom_call.1} parent=5 // pred_check_branch
        %247 = sbr.rel (%p245) target = $region40
      $region39: #{tpu_custom_call.1} parent=5 // pred_region
        // Predicated region
        $region41: #{tpu_custom_call.1} parent=39 // pred_check
          %p248 = pneg %p53
        $region42: #{tpu_custom_call.1} parent=39 // pred_check_branch
          %250 = sbr.rel (%p248) target = $region44
        $region43: #{tpu_custom_call.1} parent=39 // pred_region
          %s251 = sand.u32 %s43, 1
          %s252 = scalar_lea.sflag [#allocation3], %s251
          %s253 = sand.u32 %s43, 1
          %s254 = smul.addr %s253, 8
          %s255 = scalar_lea.vmem [#allocation2], %s254
          %s257 = ssub.s32 128, 128
          %258 = vsyncadd %s252, %s257
          %s259 = smul.addr %s27, 2
          %s260 = smul.addr %s26, 4
          %s261 = sadd.s32 %s259, %s260
          %s262 = smul.addr %s261, 64
          %s263 = scalar_lea.hbm %s0, %s262
          %s265 = sshll.u32 %s255, 4
          %s266 = int_to_ptr.vmem [resolvable:$true] %s265
          %268 = dma.hbm_to_vmem [thread:$0]  %s263, 128, %s266, %s252
        $region44: #{tpu_custom_call.1} parent=39 // pred_fallthru
          _
      $region40: #{tpu_custom_call.1} parent=5 // pred_fallthru
        _
      %p269 = scmp.le.s32.totalorder 1, %s19
      %p270 = scmp.lt.s32.totalorder %s19, 5
      %p271 = pnand %p269, %p270
      %p272 = pneg %p271
      // Predicated region
      $region45: #{tpu_custom_call.1} parent=5 // pred_check
        _
      $region46: #{tpu_custom_call.1} parent=5 // pred_check_branch
        %274 = sbr.rel (%p271) target = $region48
      $region47: #{tpu_custom_call.1} parent=5 // pred_region
        %s275 = ssub.s32 %s19, 1
        %s276 = sand.u32 %s46, 1
        %s277 = scalar_lea.sflag [#allocation3], %s276
        %s278 = sand.u32 %s46, 1
        %s279 = smul.addr %s278, 8
        %s280 = scalar_lea.vmem [#allocation2], %s279
        // Predicated region
        $region49: #{tpu_custom_call.1} parent=47 // pred_check
          %p281 = pneg %p59
        $region50: #{tpu_custom_call.1} parent=47 // pred_check_branch
          %283 = sbr.rel (%p281) target = $region52
        $region51: #{tpu_custom_call.1} parent=47 // pred_region
          %284 = dma.done %s277, 128
        $region52: #{tpu_custom_call.1} parent=47 // pred_fallthru
          _
        %s285 = sand.u32 %s46, 1
        %s286 = scalar_lea.sflag [#allocation3], %s285
        %s287 = sand.u32 %s46, 1
        %s288 = smul.addr %s287, 8
        %s289 = scalar_lea.vmem [#allocation2], %s288
        %p290 = pneg %p59
        %p291 = pneg %p56
        %p292 = pneg %p80
        %p293 = pneg %p77
        %p294 = pneg %p101
        %p295 = pneg %p98
        %p296 = pneg %p122
        %p297 = pneg %p119
        %p298 = pneg %p143
        %p299 = pneg %p140
        %p300 = pneg %p164
        %p301 = pneg %p161
        %p302 = pneg %p185
        %p303 = pneg %p182
        %p304 = pneg %p211
        %p305 = pneg %p208
        %s306 = sand.u32 %s198, 1
        %s307 = scalar_lea.sflag [#allocation4], %s306
        %s308 = sand.u32 %s198, 1
        %s309 = smul.addr %s308, 16
        %s310 = scalar_lea.vmem [#allocation5], %s309
        %v312 = vld [vmem:[%s280] sm:$0xff]
        %v314 = vunpack.c.l.b16 %v312
        %v315 = vunpack.c.h.b16 %v312
        %v316 = vpack.c.b16 %v314, %v314
        %v317 = vpack.c.b16 %v315, %v315
        %318 = vrot.lane.b32.xlu0 %v316, 127
        %v319 = vpop.permute.xlu0 %318
        %320 = vrot.lane.b32.xlu0 %v317, 127
        %v321 = vpop.permute.xlu0 %320
        %vm322 = vcmask 1039360
        %v323 = vsel %vm322, %v319, %v321
        %324 = vrot.lane.b32.xlu0 %v316, 126
        %v325 = vpop.permute.xlu0 %324
        %326 = vrot.lane.b32.xlu0 %v317, 126
        %v327 = vpop.permute.xlu0 %326
        %vm328 = vcmask 1031168
        %v329 = vsel %vm328, %v325, %v327
        %330 = vrot.lane.b32.xlu0 %v316, 110
        %v331 = vpop.permute.xlu0 %330
        %332 = vrot.lane.b32.xlu0 %v317, 110
        %v333 = vpop.permute.xlu0 %332
        %vm334 = vcmask 900096
        %v335 = vsel %vm334, %v331, %v333
        %336 = vrot.lane.b32.xlu0 %v316, 109
        %v337 = vpop.permute.xlu0 %336
        %338 = vrot.lane.b32.xlu0 %v317, 109
        %v339 = vpop.permute.xlu0 %338
        %vm340 = vcmask 891904
        %v341 = vsel %vm340, %v337, %v339
        %342 = vrot.lane.b32.xlu0 %v316, 108
        %v343 = vpop.permute.xlu0 %342
        %344 = vrot.lane.b32.xlu0 %v317, 108
        %v345 = vpop.permute.xlu0 %344
        %vm346 = vcmask 883712
        %v347 = vsel %vm346, %v343, %v345
        %348 = vrot.lane.b32.xlu0 %v316, 92
        %v349 = vpop.permute.xlu0 %348
        %350 = vrot.lane.b32.xlu0 %v317, 92
        %v351 = vpop.permute.xlu0 %350
        %vm352 = vcmask 752640
        %v353 = vsel %vm352, %v349, %v351
        %354 = vrot.lane.b32.xlu0 %v316, 91
        %v355 = vpop.permute.xlu0 %354
        %356 = vrot.lane.b32.xlu0 %v317, 91
        %v357 = vpop.permute.xlu0 %356
        %vm358 = vcmask 744448
        %v359 = vsel %vm358, %v355, %v357
        %360 = vrot.lane.b32.xlu0 %v316, 90
        %v361 = vpop.permute.xlu0 %360
        %362 = vrot.lane.b32.xlu0 %v317, 90
        %v363 = vpop.permute.xlu0 %362
        %vm364 = vcmask 736256
        %v365 = vsel %vm364, %v361, %v363
        %vm366 = vcmask 1043456
        %v369 = vsel %vm366, %v316, %v323
        %v373 = vsel %vm366, %v317, %v321
        %v377 = vsel %vm366, %v329, %v335
        %v381 = vsel %vm366, %v327, %v333
        %v385 = vsel %vm366, %v341, %v347
        %v389 = vsel %vm366, %v339, %v345
        %v393 = vsel %vm366, %v353, %v359
        %v397 = vsel %vm366, %v351, %v357
        %v399 = vld [vmem:[%s1] sm:$0x3]
        %v400 = vld [vmem:[%s2] sm:$0xf]
        %402 = vset.pattern.permute.xlu0 0
        %403 = vperm.xlu0 %402, %v400
        %v404 = vpop.permute.xlu0 %403
        %vm406 = vcmask 588800
        %v408 = vsel %vm406, %v399, 0
        %v411 = vsel %vm366, %v365, 0
        %v414 = vsel %vm366, %v363, 0
        %416 = vmatprep.subr.bf16.mxu0 0
        %417 = vmatpush1.bf16.msra.mxu0 0
        %418 = vmatprep.subr.bf16.mxu0 0
        %419 = vmatpush1.bf16.msra.mxu0 0
        %420 = vmatprep.subr.bf16.mxu0 0
        %421 = vmatpush1.bf16.msra.mxu0 0
        %422 = vmatprep.subr.bf16.mxu0 %v414
        %423 = vmatpush1.bf16.msra.mxu0 %v411
        %424 = vmatprep.subr.bf16.mxu0 %v397
        %425 = vmatpush1.bf16.msra.mxu0 %v393
        %426 = vmatprep.subr.bf16.mxu0 %v389
        %427 = vmatpush1.bf16.msra.mxu0 %v385
        %428 = vmatprep.subr.bf16.mxu0 %v381
        %429 = vmatpush1.bf16.msra.mxu0 %v377
        %430 = vmatprep.subr.bf16.mxu0 %v373
        %431 = vmatpush1.bf16.msra.mxu0 %v369
        %432 = vmatprep.subr.bf16.mxu0 0
        %433 = vmatpush2.bf16.msra.mxu0 0
        %434 = vmatprep.subr.bf16.mxu0 0
        %435 = vmatpush2.bf16.msra.mxu0 0
        %436 = vmatprep.subr.bf16.mxu0 0
        %437 = vmatpush2.bf16.msra.mxu0 0
        %438 = vmatprep.subr.bf16.mxu0 0
        %439 = vmatpush2.bf16.msra.mxu0 0
        %440 = vmatprep.subr.bf16.mxu0 0
        %441 = vmatpush2.bf16.msra.mxu0 0
        %442 = vmatprep.subr.bf16.mxu0 0
        %443 = vmatpush2.bf16.msra.mxu0 0
        %444 = vmatprep.subr.bf16.mxu0 0
        %445 = vmatpush2.bf16.msra.mxu0 0
        %446 = vmatprep.subr.bf16.mxu0 0
        %447 = vmatpush2.bf16.msra.mxu0 0
        %448 = vmatprep.mubr.bf16.mxu0 0
        %449 = vmatmul.mubr.bf16.gmra.mxu0 %v408
        %v450 = vpop.f32.mrf.mxu0
        %v451 = vadd.f32 %v404, %v450
        %v452 = vpop.f32.mrf.mxu0
        %v453 = vadd.f32 %v404, %v452
        %v454 = vpop.f32.mrf.mxu0
        %v455 = vpop.f32.mrf.mxu0
        %456 = vdwg.mxu0
        %v457 = vmax.f32 %v451, 0.0
        %v458 = vmax.f32 %v453, 0.0
        %v461 = vcombine.low %v457, %v458
        %s463 = smul.u32 %s29, 2
        %s464 = smul.addr %s463, 4
        %s465 = scalar_lea.vmem %s310, %s464 [#allocation5]
        %vm466 = vcmask 130052
        %vm467 = vmor %vm466, %vm366
        %468 = vst.msk [vmem:[%s465] sm:$0xff] %vm467, %v461
        %p469 = scmp.eq.s32.totalorder %s29, 1
        // Predicated region
        $region53: #{tpu_custom_call.1} parent=47 // pred_check
          %p470 = pneg %p469
        $region54: #{tpu_custom_call.1} parent=47 // pred_check_branch
          %472 = sbr.rel (%p470) target = $region56
        $region55: #{tpu_custom_call.1} parent=47 // pred_region
          %v473 = vld [vmem:[%s310] sm:$0xff]
          %v474 = vld [vmem:[%s310 + $0x8] sm:$0xff]
          %v475 = vlaneseq
          %v476 = vand.u32 %v475, 127
          %v477 = vadd.s32 %v476, 128
          %vm478 = vcmp.lt.s32.totalorder %v476, 0
          %v479 = vsub.s32 0, %v476
          %v480 = vsel %vm478, %v479, %v476
          %v481 = vmul.u32.u64.compose %v480, 3817748708
          %v482 = vextract.low.u32 %v481
          %v483 = vextract.high.u32 %v481
          %v484 = vshrl.u32 %v483, 4
          %v485 = vmul.u32 %v484, 18
          %v486 = vsub.s32 %v480, %v485
          %v487 = vsub.s32 0, %v486
          %v488 = vsel %vm478, %v487, %v486
          %vm489 = vcmp.lt.s32.totalorder %v477, 0
          %v490 = vsub.s32 0, %v477
          %v491 = vsel %vm489, %v490, %v477
          %v492 = vmul.u32.u64.compose %v491, 3817748708
          %v493 = vextract.low.u32 %v492
          %v494 = vextract.high.u32 %v492
          %v495 = vshrl.u32 %v494, 4
          %v496 = vmul.u32 %v495, 18
          %v497 = vsub.s32 %v491, %v496
          %v498 = vsub.s32 0, %v497
          %v499 = vsel %vm489, %v498, %v497
          %vm500 = vcmp.ne.s32.totalorder %v488, 0
          %vm501 = vcmp.ne.s32.totalorder %v499, 0
          %vm502 = vcmp.lt.s32.totalorder %v488, 0
          %vm503 = vcmp.lt.s32.totalorder %v499, 0
          %vm504 = vmand %vm502, %vm500
          %vm505 = vmand %vm503, %vm501
          %v506 = vadd.s32 %v488, 18
          %v507 = vadd.s32 %v499, 18
          %v508 = vsel %vm504, %v506, %v488
          %v509 = vsel %vm505, %v507, %v499
          %vm510 = vcmp.lt.s32.totalorder %v508, 16
          %vm511 = vcmp.lt.s32.totalorder %v509, 16
          %v512 = vsel %vm510, 1, 0
          %v513 = vsel %vm511, 1, 0
          %vm514 = vcmp.eq.s32.totalorder %v512, 1
          %vm515 = vcmp.eq.s32.totalorder %v513, 1
          %v518 = vcombine.high %v473, %v473
          %v519 = vcombine.high %v474, %v474
          %v522 = vsel %vm514, %v473, 0.0
          %v523 = vsel %vm515, %v518, 0.0
          %v524 = vsel %vm514, %v474, 0.0
          %v525 = vsel %vm515, %v519, 0.0
          %v526 = vsel %vm366, %v522, 0.0
          %v527 = vsel %vm366, %v524, 0.0
          %v528 = vadd.f32 %v526, %v527
          %vm529 = vcmask 125952
          %v530 = vsel %vm529, %v523, 0.0
          %v531 = vsel %vm529, %v525, 0.0
          %v532 = vadd.f32 %v530, %v531
          %v533 = vsel %vm366, %v528, 0.0
          %v534 = vsel %vm529, %v532, 0.0
          %v535 = vadd.f32 %v533, %v534
          %536 = vadd.xlane.f32.xlu0 %v535
          %v537 = vpop.xlane.xlu0 %536
          %v538 = vmul.f32 %v537, 0.00390625
          %v539 = vld [vmem:[%s3] sm:$0xf]
          %v540 = vld [vmem:[%s4] sm:$0xf]
          %vm541 = vcmask 31744
          %v543 = vsel %vm541, %v539, 0
          %v546 = vsel %vm366, %v538, 0
          %548 = vmatprep.subr.mxu0 0.0
          %549 = vmatpush1.msra.mxu0 0.0
          %550 = vmatprep.subr.mxu0 0.0
          %551 = vmatpush1.msra.mxu0 0.0
          %552 = vmatprep.subr.mxu0 0.0
          %553 = vmatpush1.msra.mxu0 0.0
          %554 = vmatprep.subr.mxu0 0.0
          %555 = vmatpush1.msra.mxu0 0.0
          %556 = vmatprep.subr.mxu0 0.0
          %557 = vmatpush1.msra.mxu0 0.0
          %558 = vmatprep.subr.mxu0 0.0
          %559 = vmatpush1.msra.mxu0 0.0
          %560 = vmatprep.subr.mxu0 0.0
          %561 = vmatpush1.msra.mxu0 0.0
          %562 = vmatprep.subr.mxu0 0.0
          %563 = vmatpush1.msra.mxu0 0.0
          %564 = vmatprep.subr.mxu0 0.0
          %565 = vmatpush1.msra.mxu0 0.0
          %566 = vmatprep.subr.mxu0 0.0
          %567 = vmatpush1.msra.mxu0 0.0
          %568 = vmatprep.subr.mxu0 0.0
          %569 = vmatpush1.msra.mxu0 0.0
          %570 = vmatprep.subr.mxu0 0.0
          %571 = vmatpush1.msra.mxu0 0.0
          %572 = vmatprep.subr.mxu0 0.0
          %573 = vmatpush1.msra.mxu0 0.0
          %574 = vmatprep.subr.mxu0 0.0
          %575 = vmatpush1.msra.mxu0 0.0
          %576 = vmatprep.subr.mxu0 0.0
          %577 = vmatpush1.msra.mxu0 0.0
          %578 = vmatprep.subr.mxu0 0.0
          %579 = vmatpush1.msra.mxu0 %v546
          %580 = vmatprep.subr.mxu0 0.0
          %581 = vmatpush2.msra.mxu0 0.0
          %582 = vmatprep.subr.mxu0 0.0
          %583 = vmatpush2.msra.mxu0 0.0
          %584 = vmatprep.subr.mxu0 0.0
          %585 = vmatpush2.msra.mxu0 0.0
          %586 = vmatprep.subr.mxu0 0.0
          %587 = vmatpush2.msra.mxu0 0.0
          %588 = vmatprep.subr.mxu0 0.0
          %589 = vmatpush2.msra.mxu0 0.0
          %590 = vmatprep.subr.mxu0 0.0
          %591 = vmatpush2.msra.mxu0 0.0
          %592 = vmatprep.subr.mxu0 0.0
          %593 = vmatpush2.msra.mxu0 0.0
          %594 = vmatprep.subr.mxu0 0.0
          %595 = vmatpush2.msra.mxu0 0.0
          %596 = vmatprep.subr.mxu0 0.0
          %597 = vmatpush2.msra.mxu0 0.0
          %598 = vmatprep.subr.mxu0 0.0
          %599 = vmatpush2.msra.mxu0 0.0
          %600 = vmatprep.subr.mxu0 0.0
          %601 = vmatpush2.msra.mxu0 0.0
          %602 = vmatprep.subr.mxu0 0.0
          %603 = vmatpush2.msra.mxu0 0.0
          %604 = vmatprep.subr.mxu0 0.0
          %605 = vmatpush2.msra.mxu0 0.0
          %606 = vmatprep.subr.mxu0 0.0
          %607 = vmatpush2.msra.mxu0 0.0
          %608 = vmatprep.subr.mxu0 0.0
          %609 = vmatpush2.msra.mxu0 0.0
          %610 = vmatprep.subr.mxu0 0.0
          %611 = vmatpush2.msra.mxu0 0.0
          %612 = vmatprep.mubr.f32.mxu0 0.0
          %613 = vmatmul.mubr.f32.gmra.mxu0 %v543
          %v614 = vpop.f32.mrf.mxu0
          %v615 = vadd.f32 %v540, %v614
          %v616 = vpop.f32.mrf.mxu0
          %617 = vdwg.mxu0
          %v618 = vmax.f32 %v615, 0.0
          %v619 = vld [vmem:[%s5] sm:$0xf]
          %v620 = vld [vmem:[%s6] sm:$0xf]
          %v622 = vsel %vm541, %v619, 0
          %v625 = vsel %vm366, %v618, 0
          %627 = vmatprep.subr.mxu0 0.0
          %628 = vmatpush1.msra.mxu0 0.0
          %629 = vmatprep.subr.mxu0 0.0
          %630 = vmatpush1.msra.mxu0 0.0
          %631 = vmatprep.subr.mxu0 0.0
          %632 = vmatpush1.msra.mxu0 0.0
          %633 = vmatprep.subr.mxu0 0.0
          %634 = vmatpush1.msra.mxu0 0.0
          %635 = vmatprep.subr.mxu0 0.0
          %636 = vmatpush1.msra.mxu0 0.0
          %637 = vmatprep.subr.mxu0 0.0
          %638 = vmatpush1.msra.mxu0 0.0
          %639 = vmatprep.subr.mxu0 0.0
          %640 = vmatpush1.msra.mxu0 0.0
          %641 = vmatprep.subr.mxu0 0.0
          %642 = vmatpush1.msra.mxu0 0.0
          %643 = vmatprep.subr.mxu0 0.0
          %644 = vmatpush1.msra.mxu0 0.0
          %645 = vmatprep.subr.mxu0 0.0
          %646 = vmatpush1.msra.mxu0 0.0
          %647 = vmatprep.subr.mxu0 0.0
          %648 = vmatpush1.msra.mxu0 0.0
          %649 = vmatprep.subr.mxu0 0.0
          %650 = vmatpush1.msra.mxu0 0.0
          %651 = vmatprep.subr.mxu0 0.0
          %652 = vmatpush1.msra.mxu0 0.0
          %653 = vmatprep.subr.mxu0 0.0
          %654 = vmatpush1.msra.mxu0 0.0
          %655 = vmatprep.subr.mxu0 0.0
          %656 = vmatpush1.msra.mxu0 0.0
          %657 = vmatprep.subr.mxu0 0.0
          %658 = vmatpush1.msra.mxu0 %v625
          %659 = vmatprep.subr.mxu0 0.0
          %660 = vmatpush2.msra.mxu0 0.0
          %661 = vmatprep.subr.mxu0 0.0
          %662 = vmatpush2.msra.mxu0 0.0
          %663 = vmatprep.subr.mxu0 0.0
          %664 = vmatpush2.msra.mxu0 0.0
          %665 = vmatprep.subr.mxu0 0.0
          %666 = vmatpush2.msra.mxu0 0.0
          %667 = vmatprep.subr.mxu0 0.0
          %668 = vmatpush2.msra.mxu0 0.0
          %669 = vmatprep.subr.mxu0 0.0
          %670 = vmatpush2.msra.mxu0 0.0
          %671 = vmatprep.subr.mxu0 0.0
          %672 = vmatpush2.msra.mxu0 0.0
          %673 = vmatprep.subr.mxu0 0.0
          %674 = vmatpush2.msra.mxu0 0.0
          %675 = vmatprep.subr.mxu0 0.0
          %676 = vmatpush2.msra.mxu0 0.0
          %677 = vmatprep.subr.mxu0 0.0
          %678 = vmatpush2.msra.mxu0 0.0
          %679 = vmatprep.subr.mxu0 0.0
          %680 = vmatpush2.msra.mxu0 0.0
          %681 = vmatprep.subr.mxu0 0.0
          %682 = vmatpush2.msra.mxu0 0.0
          %683 = vmatprep.subr.mxu0 0.0
          %684 = vmatpush2.msra.mxu0 0.0
          %685 = vmatprep.subr.mxu0 0.0
          %686 = vmatpush2.msra.mxu0 0.0
          %687 = vmatprep.subr.mxu0 0.0
          %688 = vmatpush2.msra.mxu0 0.0
          %689 = vmatprep.subr.mxu0 0.0
          %690 = vmatpush2.msra.mxu0 0.0
          %691 = vmatprep.mubr.f32.mxu0 0.0
          %692 = vmatmul.mubr.f32.gmra.mxu0 %v622
          %v693 = vpop.f32.mrf.mxu0
          %v694 = vadd.f32 %v620, %v693
          %v695 = vpop.f32.mrf.mxu0
          %696 = vdwg.mxu0
          %v697 = vsub.f32 0.0, %v694
          %v698 = vmul.f32 %v697, 1.442695
          %v699 = vpow.pop %v698
          %v700 = vadd.f32 %v699, 1.0
          %v701 = vrcp.pop %v700
          %v702 = vmul.f32 1.0, %v701
          %v703 = vadd.f32 %v702, 1.0
          %705 = vset.pattern.permute.xlu0 0
          %706 = vperm.xlu0 %705, %v703
          %v707 = vpop.permute.xlu0 %706
          %v709 = vunpack.c.l.s4 839922192
          %v710 = vunpack.c.0.s8 %v709
          %v711 = vlaneseq
          %v712 = vshrl.u32 %v711, 7
          %v713 = vsub.s32 %v710, %v712
          %v714 = vrot.slane %v707, %v713
          %v716 = vmul.f32 %v473, %v714
          %v717 = vmul.f32 %v474, %v714
          %718 = vst.msk [vmem:[%s310] sm:$0xff] %vm467, %v716
          %719 = vst.msk [vmem:[%s310 + $0x8] sm:$0xff] %vm467, %v717
        $region56: #{tpu_custom_call.1} parent=47 // pred_fallthru
          _
        %s720 = sand.u32 %s198, 1
        %s721 = scalar_lea.sflag [#allocation4], %s720
        %s722 = sand.u32 %s198, 1
        %s723 = smul.addr %s722, 16
        %s724 = scalar_lea.vmem [#allocation5], %s723
        // Predicated region
        $region57: #{tpu_custom_call.1} parent=47 // pred_check
          %p725 = pneg %p208
        $region58: #{tpu_custom_call.1} parent=47 // pred_check_branch
          %727 = sbr.rel (%p725) target = $region60
        $region59: #{tpu_custom_call.1} parent=47 // pred_region
          %s729 = ssub.s32 256, 256
          %730 = vsyncadd %s721, %s729
          %s731 = smul.addr %s28, 4
          %s732 = smul.addr %s731, 64
          %s733 = scalar_lea.hbm %s7, %s732
          %s734 = sshll.u32 %s724, 4
          %s735 = int_to_ptr.vmem [resolvable:$true] %s734
          %740 = dma.vmem_to_hbm [thread:$0]  %s735, 256, %s733, %s721, 128, 128, 8
        $region60: #{tpu_custom_call.1} parent=47 // pred_fallthru
          _
      $region48: #{tpu_custom_call.1} parent=5 // pred_fallthru
        _
      %p741 = scmp.le.s32.totalorder 2, %s19
      // Predicated region
      $region61: #{tpu_custom_call.1} parent=5 // pred_check
        %p742 = pneg %p741
      $region62: #{tpu_custom_call.1} parent=5 // pred_check_branch
        %744 = sbr.rel (%p742) target = $region64
      $region63: #{tpu_custom_call.1} parent=5 // pred_region
        %s745 = ssub.s32 %s19, 2
        // Predicated region
        $region65: #{tpu_custom_call.1} parent=63 // pred_check
          %p746 = pneg %p214
        $region66: #{tpu_custom_call.1} parent=63 // pred_check_branch
          %748 = sbr.rel (%p746) target = $region68
        $region67: #{tpu_custom_call.1} parent=63 // pred_region
          %s749 = sand.u32 %s199, 1
          %s750 = scalar_lea.sflag [#allocation4], %s749
          %s751 = sand.u32 %s199, 1
          %s752 = smul.addr %s751, 16
          %s753 = scalar_lea.vmem [#allocation5], %s752
          %754 = dma.done %s750, 256
        $region68: #{tpu_custom_call.1} parent=63 // pred_fallthru
          _
      $region64: #{tpu_custom_call.1} parent=5 // pred_fallthru
        _
    $region6: #{tpu_custom_call.1} parent=1 // loop_footer
      %s23 = sadd.s32 1, %s19
    $region7: #{tpu_custom_call.1} parent=1 // loop_footer_branch
      %18 = sbr.rel target = $region3
    $region8: #{tpu_custom_call.1} parent=1 // loop_exit
      _
    %755 = vsyncpa [#allocation3], 1
    %s756 = scalar_lea.sflag [#allocation3], 1
    %757 = vsyncpa %s756, 1
    %758 = vsyncpa [#allocation4], 1
    %s759 = scalar_lea.sflag [#allocation4], 1
    %760 = vsyncpa %s759, 1

</llo_original>
